<compile_context>
chip_gen: v7x
topology: tpu7x:2x2x1
jax: 0.10.0
libtpu: 0.0.40
codegen_flags: <defaults>
</compile_context>

<pallas_src>
import functools

import jax
import jax.numpy as jnp
from jax.experimental import pallas as pl
from jax.experimental.pallas import tpu as pltpu


def _gaussian_lstm_kernel(xeps_ref, w0_ref, wl_ref, whead_ref, st0_ref,
                          head_ref, st_ref,
                          *, n_layers, input_size, hidden_size, output_size,
                          zero_state):
    L, In, H, O = n_layers, input_size, hidden_size, output_size

    x = xeps_ref[:, :In].astype(jnp.float32)
    eps = xeps_ref[:, In:].astype(jnp.float32)

    def cell(gates, c_prev):
        i_g = jax.nn.sigmoid(gates[:, 0 * H:1 * H])
        f_g = jax.nn.sigmoid(gates[:, 1 * H:2 * H])
        g_g = jnp.tanh(gates[:, 2 * H:3 * H])
        o_g = jax.nn.sigmoid(gates[:, 3 * H:4 * H])
        if zero_state:
            c_new = i_g * g_g                      # c_prev known-zero
        else:
            c_new = f_g * c_prev + i_g * g_g
        h_new = o_g * jnp.tanh(c_new)
        return h_new, c_new

    pieces = []

    # ---- layer 0: embed folded into the input weights ----
    if zero_state:
        gates = (jnp.dot(x, w0_ref[0:In, :],
                         preferred_element_type=jnp.float32)
                 + w0_ref[In + H:In + H + 1, :])
        c_prev = None
    else:
        h_prev = st0_ref[0, :, 0:H].astype(jnp.float32)
        c_prev = st0_ref[0, :, H:2 * H].astype(jnp.float32)
        gates = (jnp.dot(jnp.concatenate([x, h_prev], axis=-1),
                         w0_ref[0:In + H, :],
                         preferred_element_type=jnp.float32)
                 + w0_ref[In + H:In + H + 1, :])
    h_in, c_new = cell(gates, c_prev)
    pieces += [h_in, c_new]

    # ---- layers 1..L-1: fused [h_in | h_prev] @ [w_ih ; w_hh] ----
    for l in range(1, L):
        if zero_state:
            gates = (jnp.dot(h_in, wl_ref[l - 1, 0:H, :],
                             preferred_element_type=jnp.float32)
                     + wl_ref[l - 1, 2 * H:2 * H + 1, :])
            c_prev = None
        else:
            h_prev = st0_ref[l, :, 0:H].astype(jnp.float32)
            c_prev = st0_ref[l, :, H:2 * H].astype(jnp.float32)
            gates = (jnp.dot(jnp.concatenate([h_in, h_prev], axis=-1),
                             wl_ref[l - 1, 0:2 * H, :],
                             preferred_element_type=jnp.float32)
                     + wl_ref[l - 1, 2 * H:2 * H + 1, :])
        h_in, c_new = cell(gates, c_prev)
        pieces += [h_in, c_new]

    # ---- fused mu|logvar head + reparameterize (exp runs on the EUP) ----
    head = (jnp.dot(h_in, whead_ref[0:H, :],
                    preferred_element_type=jnp.float32)
            + whead_ref[H:H + 1, :])
    mu = head[:, 0:O]
    logvar = head[:, O:2 * O]
    z = eps * jnp.exp(0.5 * logvar) + mu

    # Single lane-dense store per output slab.
    head_ref[...] = jnp.concatenate([z, mu, logvar],
                                    axis=-1).astype(head_ref.dtype)
    st_ref[...] = jnp.concatenate(pieces, axis=-1).astype(st_ref.dtype)


def _pick_batch_tile(B):
    # >=2 grid steps when possible so v7x's two TensorCores both get work via
    # the "parallel" batch axis; cap the tile so per-step VMEM stays well
    # under the scoped defaults (16 MiB v5e / 32 MiB v6e,v7x) at large B.
    if B < 16 or B % 8 != 0:
        return B
    tb = min(max(8, (B // 2) // 8 * 8), 1024)
    while tb > 8 and B % tb != 0:
        tb -= 8
    return tb if B % tb == 0 else B


def gaussian_lstm_forward(x, w_embed, b_embed, w_ih, w_hh, b_lstm,
                          h0, c0, w_mu, b_mu, w_lv, b_lv, eps,
                          *, batch_tile=None, zero_state=False):
    """Returns (z, mu, logvar, h_new, c_new)."""
    B, In = x.shape
    L, H, H4 = w_ih.shape
    assert H4 == 4 * H
    O = w_mu.shape[1]
    dtype = x.dtype
    hp = jax.lax.Precision.HIGHEST

    # ---- one-time wrapper-side weight packing (algebraically exact) ----
    w0_in = jnp.dot(w_embed, w_ih[0], precision=hp)                   # (In,4H)
    b0 = jnp.dot(b_embed, w_ih[0], precision=hp) + b_lstm[0]          # (1,4H)
    w0 = jnp.concatenate([w0_in, w_hh[0], b0], axis=0).astype(dtype)  # (In+H+1,4H)
    if L > 1:
        wl = jnp.concatenate([w_ih[1:], w_hh[1:], b_lstm[1:]],
                             axis=1).astype(dtype)                    # (L-1,2H+1,4H)
    else:
        wl = jnp.zeros((1, 2 * H + 1, 4 * H), dtype)                  # never read
    Lm1 = wl.shape[0]
    w_head = jnp.concatenate(
        [jnp.concatenate([w_mu, w_lv], axis=1),
         jnp.concatenate([b_mu, b_lv], axis=1)], axis=0).astype(dtype)  # (H+1,2O)
    xeps = jnp.concatenate([x, eps], axis=1)                          # (B, In+O)
    state0 = jnp.concatenate([h0, c0], axis=-1)                       # (L, B, 2H)

    tb = _pick_batch_tile(B) if batch_tile is None else min(batch_tile, B)
    assert B % tb == 0
    assert tb == B or tb % 8 == 0, "batch tile must be sublane-dense (x8)"
    steps = B // tb

    kernel = functools.partial(_gaussian_lstm_kernel, n_layers=L,
                               input_size=In, hidden_size=H, output_size=O,
                               zero_state=zero_state)

    bcast2 = lambda i: (0, 0)
    bcast3 = lambda i: (0, 0, 0)
    batch2 = lambda i: (i, 0)
    batch3 = lambda i: (0, i, 0)

    if zero_state:
        flops = B * (2 * In * 4 * H + (L - 1) * 2 * H * 4 * H + 2 * H * 2 * O)
    else:
        flops = B * (2 * (In + H) * 4 * H + (L - 1) * 2 * 2 * H * 4 * H
                     + 2 * H * 2 * O)
    transcendentals = B * (L * 5 * H + O)   # 4 gate acts + tanh(c_new), exp(z)
    bytes_accessed = sum(int(a.size) * a.dtype.itemsize
                         for a in (xeps, w0, wl, w_head, state0))
    bytes_accessed += (B * 3 * O + B * 2 * L * H) * jnp.dtype(dtype).itemsize

    head, state = pl.pallas_call(
        kernel,
        out_shape=(
            jax.ShapeDtypeStruct((B, 3 * O), dtype),      # [z | mu | logvar]
            jax.ShapeDtypeStruct((B, 2 * L * H), dtype),  # [h_l | c_l] per layer
        ),
        grid_spec=pltpu.PrefetchScalarGridSpec(
            num_scalar_prefetch=0,
            grid=(steps,),
            in_specs=[
                pl.BlockSpec((tb, In + O), batch2),            # x | eps
                pl.BlockSpec((In + H + 1, 4 * H), bcast2),     # layer-0 slab
                pl.BlockSpec((Lm1, 2 * H + 1, 4 * H), bcast3), # layers>=1 slab
                pl.BlockSpec((H + 1, 2 * O), bcast2),          # head slab
                pl.BlockSpec((L, tb, 2 * H), batch3),          # h0 | c0
            ],
            out_specs=[
                pl.BlockSpec((tb, 3 * O), batch2),
                pl.BlockSpec((tb, 2 * L * H), batch2),
            ],
        ),
        compiler_params=pltpu.CompilerParams(
            dimension_semantics=("parallel",),
        ),
        cost_estimate=pl.CostEstimate(
            flops=int(flops),
            transcendentals=int(transcendentals),
            bytes_accessed=int(bytes_accessed),
        ),
    )(xeps, w0, wl, w_head, state0)

    z, mu, logvar = head[:, :O], head[:, O:2 * O], head[:, 2 * O:]
    st = state.reshape(B, L, 2, H).transpose(1, 2, 0, 3)   # (L, 2, B, H)
    return z, mu, logvar, st[:, 0], st[:, 1]


def _reference(x, w_embed, b_embed, w_ih, w_hh, b_lstm, h0, c0,
               w_mu, b_mu, w_lv, b_lv, eps):
    """Mirrors the original torch module structure (un-fused)."""
    L, H, _ = w_ih.shape
    h_in = x @ w_embed + b_embed
    hs, cs = [], []
    for l in range(L):
        gates = h_in @ w_ih[l] + h0[l] @ w_hh[l] + b_lstm[l]
        i = jax.nn.sigmoid(gates[:, 0 * H:1 * H])
        f = jax.nn.sigmoid(gates[:, 1 * H:2 * H])
        g = jnp.tanh(gates[:, 2 * H:3 * H])
        o = jax.nn.sigmoid(gates[:, 3 * H:4 * H])
        c_new = f * c0[l] + i * g
        h_new = o * jnp.tanh(c_new)
        hs.append(h_new)
        cs.append(c_new)
        h_in = h_new
    mu = h_in @ w_mu + b_mu
    logvar = h_in @ w_lv + b_lv
    z = eps * jnp.exp(0.5 * logvar) + mu
    return z, mu, logvar, jnp.stack(hs), jnp.stack(cs)


if __name__ == "__main__":
    # Small shapes consistent with the module: batch=16 (gives a 2-step
    # parallel grid with tb=8), input_size=16, hidden_size=32 (4H = 128
    # lanes), output_size=32, 2 layers.
    B, In, H, O, L = 16, 16, 32, 32, 2

    key = jax.random.PRNGKey(0)
    ks = jax.random.split(key, 13)
    s = 0.1
    x = jax.random.normal(ks[0], (B, In), jnp.float32)
    w_embed = s * jax.random.normal(ks[1], (In, H), jnp.float32)
    b_embed = s * jax.random.normal(ks[2], (1, H), jnp.float32)
    w_ih = s * jax.random.normal(ks[3], (L, H, 4 * H), jnp.float32)
    w_hh = s * jax.random.normal(ks[4], (L, H, 4 * H), jnp.float32)
    b_lstm = s * jax.random.normal(ks[5], (L, 1, 4 * H), jnp.float32)  # b_ih+b_hh
    w_mu = s * jax.random.normal(ks[6], (H, O), jnp.float32)
    b_mu = s * jax.random.normal(ks[7], (1, O), jnp.float32)
    w_lv = s * jax.random.normal(ks[8], (H, O), jnp.float32)
    b_lv = s * jax.random.normal(ks[9], (1, O), jnp.float32)
    # TODO(synk): torch generates eps inside forward (.normal_()); here eps is
    # a deterministic host-side input so the kernel output is verifiable.
    eps = jax.random.normal(ks[10], (B, O), jnp.float32)
    # Non-zero recurrent state exercises the general (stateful) path.
    h0 = 0.5 * jax.random.normal(ks[11], (L, B, H), jnp.float32)
    c0 = 0.5 * jax.random.normal(ks[12], (L, B, H), jnp.float32)

    def check(outs, refs, tag):
        # Tolerance: the embed-fold reorders matmuls, so under TPU's default
        # bf16-pass matmul precision kernel vs. reference differ at ~1e-3.
        for name, got, want in zip(("z", "mu", "logvar", "h_new", "c_new"),
                                   outs, refs):
            assert got.shape == want.shape, (tag, name, got.shape, want.shape)
            err = float(jnp.max(jnp.abs(got - want)))
            assert jnp.allclose(got, want, atol=1e-2, rtol=1e-2), (tag, name, err)

    outs = jax.block_until_ready(
        gaussian_lstm_forward(x, w_embed, b_embed, w_ih, w_hh, b_lstm,
                              h0, c0, w_mu, b_mu, w_lv, b_lv, eps))
    refs = _reference(x, w_embed, b_embed, w_ih, w_hh, b_lstm, h0, c0,
                      w_mu, b_mu, w_lv, b_lv, eps)
    check(outs, refs, "general")

    # Fresh-state call (module right after init_hidden()): zero_state fast path.
    hz = jnp.zeros((L, B, H), jnp.float32)
    cz = jnp.zeros((L, B, H), jnp.float32)
    outs0 = jax.block_until_ready(
        gaussian_lstm_forward(x, w_embed, b_embed, w_ih, w_hh, b_lstm,
                              hz, cz, w_mu, b_mu, w_lv, b_lv, eps,
                              zero_state=True))
    refs0 = _reference(x, w_embed, b_embed, w_ih, w_hh, b_lstm, hz, cz,
                       w_mu, b_mu, w_lv, b_lv, eps)
    check(outs0, refs0, "zero_state")

    print("KERNEL_OK")
</pallas_src>

<mosaic_0001>
module attributes {stable_mosaic.version = 11 : i64} {
  func.func @_gaussian_lstm_kernel(%arg0: i32, %arg1: memref<8x48xf32, #tpu.memory_space<vmem>>, %arg2: memref<49x128xf32, #tpu.memory_space<vmem>>, %arg3: memref<1x65x128xf32, #tpu.memory_space<vmem>>, %arg4: memref<33x64xf32, #tpu.memory_space<vmem>>, %arg5: memref<2x8x64xf32, #tpu.memory_space<vmem>>, %arg6: memref<8x96xf32, #tpu.memory_space<vmem>>, %arg7: memref<8x128xf32, #tpu.memory_space<vmem>>) attributes {dimension_semantics = [#tpu.dimension_semantics<parallel>], iteration_bounds = array<i64: 2>, scalar_prefetch = 0 : i64, scratch_operands = 0 : i64, tpu.core_type = #tpu.core_type<tc>, window_params = [{transform_indices = @transform_0, window_bounds = array<i64: 8, 48>}, {pipeline_mode = #tpu.pipeline_mode<synchronous>, transform_indices = @transform_1, window_bounds = array<i64: 49, 128>}, {pipeline_mode = #tpu.pipeline_mode<synchronous>, transform_indices = @transform_2, window_bounds = array<i64: 1, 65, 128>}, {pipeline_mode = #tpu.pipeline_mode<synchronous>, transform_indices = @transform_3, window_bounds = array<i64: 33, 64>}, {transform_indices = @transform_4, window_bounds = array<i64: 2, 8, 64>}, {transform_indices = @transform_5, window_bounds = array<i64: 8, 96>}, {transform_indices = @transform_6, window_bounds = array<i64: 8, 128>}]} {
    %c0 = arith.constant 0 : index
    %c0_0 = arith.constant 0 : index
    %0 = vector.load %arg1[%c0, %c0_0] : memref<8x48xf32, #tpu.memory_space<vmem>>, vector<8x16xf32>
    %c0_1 = arith.constant 0 : index
    %c16 = arith.constant 16 : index
    %1 = vector.load %arg1[%c0_1, %c16] : memref<8x48xf32, #tpu.memory_space<vmem>>, vector<8x32xf32>
    %c0_2 = arith.constant 0 : index
    %c0_3 = arith.constant 0 : index
    %c0_4 = arith.constant 0 : index
    %2 = vector.load %arg5[%c0_2, %c0_3, %c0_4] : memref<2x8x64xf32, #tpu.memory_space<vmem>>, vector<1x8x32xf32>
    %3 = vector.shape_cast %2 : vector<1x8x32xf32> to vector<8x32xf32>
    %c0_5 = arith.constant 0 : index
    %c0_6 = arith.constant 0 : index
    %c32 = arith.constant 32 : index
    %4 = vector.load %arg5[%c0_5, %c0_6, %c32] : memref<2x8x64xf32, #tpu.memory_space<vmem>>, vector<1x8x32xf32>
    %5 = vector.shape_cast %4 : vector<1x8x32xf32> to vector<8x32xf32>
    %6 = tpu.concatenate %0, %3 in 1 : vector<8x16xf32>, vector<8x32xf32> -> vector<8x48xf32>
    %c0_7 = arith.constant 0 : index
    %c0_8 = arith.constant 0 : index
    %7 = vector.load %arg2[%c0_7, %c0_8] : memref<49x128xf32, #tpu.memory_space<vmem>>, vector<48x128xf32>
    %cst = arith.constant dense<0.000000e+00> : vector<8x128xf32>
    %8 = tpu.matmul %6, %7, %cst {dimension_numbers = #tpu.dot_dimension_numbers<[1], [0], [0], [1], [0, 0, 1, 1], [], []>} : vector<8x48xf32>, vector<48x128xf32>, vector<8x128xf32> -> vector<8x128xf32>
    %c48 = arith.constant 48 : index
    %c0_9 = arith.constant 0 : index
    %9 = vector.load %arg2[%c48, %c0_9] : memref<49x128xf32, #tpu.memory_space<vmem>>, vector<1x128xf32>
    %10 = vector.broadcast %9 : vector<1x128xf32> to vector<8x128xf32>
    %11 = arith.addf %8, %10 : vector<8x128xf32>
    %12 = vector.extract_strided_slice %11 {offsets = [0, 0], sizes = [8, 32], strides = [1, 1]} : vector<8x128xf32> to vector<8x32xf32>
    %13 = arith.negf %12 : vector<8x32xf32>
    %14 = math.exp %13 : vector<8x32xf32>
    %cst_10 = arith.constant 1.000000e+00 : f32
    %15 = vector.broadcast %cst_10 : f32 to vector<8x32xf32>
    %16 = arith.addf %15, %14 : vector<8x32xf32>
    %17 = arith.divf %15, %16 : vector<8x32xf32>
    %18 = vector.extract_strided_slice %11 {offsets = [0, 32], sizes = [8, 32], strides = [1, 1]} : vector<8x128xf32> to vector<8x32xf32>
    %19 = arith.negf %18 : vector<8x32xf32>
    %20 = math.exp %19 : vector<8x32xf32>
    %cst_11 = arith.constant 1.000000e+00 : f32
    %21 = vector.broadcast %cst_11 : f32 to vector<8x32xf32>
    %22 = arith.addf %21, %20 : vector<8x32xf32>
    %23 = arith.divf %21, %22 : vector<8x32xf32>
    %24 = vector.extract_strided_slice %11 {offsets = [0, 64], sizes = [8, 32], strides = [1, 1]} : vector<8x128xf32> to vector<8x32xf32>
    %25 = math.tanh %24 : vector<8x32xf32>
    %26 = vector.extract_strided_slice %11 {offsets = [0, 96], sizes = [8, 32], strides = [1, 1]} : vector<8x128xf32> to vector<8x32xf32>
    %27 = arith.negf %26 : vector<8x32xf32>
    %28 = math.exp %27 : vector<8x32xf32>
    %cst_12 = arith.constant 1.000000e+00 : f32
    %29 = vector.broadcast %cst_12 : f32 to vector<8x32xf32>
    %30 = arith.addf %29, %28 : vector<8x32xf32>
    %31 = arith.divf %29, %30 : vector<8x32xf32>
    %32 = arith.mulf %23, %5 : vector<8x32xf32>
    %33 = arith.mulf %17, %25 : vector<8x32xf32>
    %34 = arith.addf %32, %33 : vector<8x32xf32>
    %35 = math.tanh %34 : vector<8x32xf32>
    %36 = arith.mulf %31, %35 : vector<8x32xf32>
    %c1 = arith.constant 1 : index
    %c0_13 = arith.constant 0 : index
    %c0_14 = arith.constant 0 : index
    %37 = vector.load %arg5[%c1, %c0_13, %c0_14] : memref<2x8x64xf32, #tpu.memory_space<vmem>>, vector<1x8x32xf32>
    %38 = vector.shape_cast %37 : vector<1x8x32xf32> to vector<8x32xf32>
    %c1_15 = arith.constant 1 : index
    %c0_16 = arith.constant 0 : index
    %c32_17 = arith.constant 32 : index
    %39 = vector.load %arg5[%c1_15, %c0_16, %c32_17] : memref<2x8x64xf32, #tpu.memory_space<vmem>>, vector<1x8x32xf32>
    %40 = vector.shape_cast %39 : vector<1x8x32xf32> to vector<8x32xf32>
    %41 = tpu.concatenate %36, %38 in 1 : vector<8x32xf32>, vector<8x32xf32> -> vector<8x64xf32>
    %c0_18 = arith.constant 0 : index
    %c0_19 = arith.constant 0 : index
    %c0_20 = arith.constant 0 : index
    %42 = vector.load %arg3[%c0_18, %c0_19, %c0_20] : memref<1x65x128xf32, #tpu.memory_space<vmem>>, vector<1x64x128xf32>
    %43 = vector.shape_cast %42 : vector<1x64x128xf32> to vector<64x128xf32>
    %cst_21 = arith.constant dense<0.000000e+00> : vector<8x128xf32>
    %44 = tpu.matmul %41, %43, %cst_21 {dimension_numbers = #tpu.dot_dimension_numbers<[1], [0], [0], [1], [0, 0, 1, 1], [], []>} : vector<8x64xf32>, vector<64x128xf32>, vector<8x128xf32> -> vector<8x128xf32>
    %c0_22 = arith.constant 0 : index
    %c64 = arith.constant 64 : index
    %c0_23 = arith.constant 0 : index
    %45 = vector.load %arg3[%c0_22, %c64, %c0_23] : memref<1x65x128xf32, #tpu.memory_space<vmem>>, vector<1x1x128xf32>
    %46 = vector.shape_cast %45 : vector<1x1x128xf32> to vector<1x128xf32>
    %47 = vector.broadcast %46 : vector<1x128xf32> to vector<8x128xf32>
    %48 = arith.addf %44, %47 : vector<8x128xf32>
    %49 = vector.extract_strided_slice %48 {offsets = [0, 0], sizes = [8, 32], strides = [1, 1]} : vector<8x128xf32> to vector<8x32xf32>
    %50 = arith.negf %49 : vector<8x32xf32>
    %51 = math.exp %50 : vector<8x32xf32>
    %cst_24 = arith.constant 1.000000e+00 : f32
    %52 = vector.broadcast %cst_24 : f32 to vector<8x32xf32>
    %53 = arith.addf %52, %51 : vector<8x32xf32>
    %54 = arith.divf %52, %53 : vector<8x32xf32>
    %55 = vector.extract_strided_slice %48 {offsets = [0, 32], sizes = [8, 32], strides = [1, 1]} : vector<8x128xf32> to vector<8x32xf32>
    %56 = arith.negf %55 : vector<8x32xf32>
    %57 = math.exp %56 : vector<8x32xf32>
    %cst_25 = arith.constant 1.000000e+00 : f32
    %58 = vector.broadcast %cst_25 : f32 to vector<8x32xf32>
    %59 = arith.addf %58, %57 : vector<8x32xf32>
    %60 = arith.divf %58, %59 : vector<8x32xf32>
    %61 = vector.extract_strided_slice %48 {offsets = [0, 64], sizes = [8, 32], strides = [1, 1]} : vector<8x128xf32> to vector<8x32xf32>
    %62 = math.tanh %61 : vector<8x32xf32>
    %63 = vector.extract_strided_slice %48 {offsets = [0, 96], sizes = [8, 32], strides = [1, 1]} : vector<8x128xf32> to vector<8x32xf32>
    %64 = arith.negf %63 : vector<8x32xf32>
    %65 = math.exp %64 : vector<8x32xf32>
    %cst_26 = arith.constant 1.000000e+00 : f32
    %66 = vector.broadcast %cst_26 : f32 to vector<8x32xf32>
    %67 = arith.addf %66, %65 : vector<8x32xf32>
    %68 = arith.divf %66, %67 : vector<8x32xf32>
    %69 = arith.mulf %60, %40 : vector<8x32xf32>
    %70 = arith.mulf %54, %62 : vector<8x32xf32>
    %71 = arith.addf %69, %70 : vector<8x32xf32>
    %72 = math.tanh %71 : vector<8x32xf32>
    %73 = arith.mulf %68, %72 : vector<8x32xf32>
    %c0_27 = arith.constant 0 : index
    %c0_28 = arith.constant 0 : index
    %74 = vector.load %arg4[%c0_27, %c0_28] : memref<33x64xf32, #tpu.memory_space<vmem>>, vector<32x64xf32>
    %cst_29 = arith.constant dense<0.000000e+00> : vector<8x64xf32>
    %75 = tpu.matmul %73, %74, %cst_29 {dimension_numbers = #tpu.dot_dimension_numbers<[1], [0], [0], [1], [0, 0, 1, 1], [], []>} : vector<8x32xf32>, vector<32x64xf32>, vector<8x64xf32> -> vector<8x64xf32>
    %c32_30 = arith.constant 32 : index
    %c0_31 = arith.constant 0 : index
    %76 = vector.load %arg4[%c32_30, %c0_31] : memref<33x64xf32, #tpu.memory_space<vmem>>, vector<1x64xf32>
    %77 = vector.broadcast %76 : vector<1x64xf32> to vector<8x64xf32>
    %78 = arith.addf %75, %77 : vector<8x64xf32>
    %79 = vector.extract_strided_slice %78 {offsets = [0, 0], sizes = [8, 32], strides = [1, 1]} : vector<8x64xf32> to vector<8x32xf32>
    %80 = vector.extract_strided_slice %78 {offsets = [0, 32], sizes = [8, 32], strides = [1, 1]} : vector<8x64xf32> to vector<8x32xf32>
    %cst_32 = arith.constant 5.000000e-01 : f32
    %81 = vector.broadcast %cst_32 : f32 to vector<8x32xf32>
    %82 = arith.mulf %81, %80 : vector<8x32xf32>
    %83 = math.exp %82 : vector<8x32xf32>
    %84 = arith.mulf %1, %83 : vector<8x32xf32>
    %85 = arith.addf %84, %79 : vector<8x32xf32>
    %86 = tpu.concatenate %85, %79, %80 in 1 : vector<8x32xf32>, vector<8x32xf32>, vector<8x32xf32> -> vector<8x96xf32>
    %c0_33 = arith.constant 0 : index
    %c0_34 = arith.constant 0 : index
    %87 = vector.load %arg6[%c0_33, %c0_34] : memref<8x96xf32, #tpu.memory_space<vmem>>, vector<8x96xf32>
    tpu.vector_store %arg6[%c0_33, %c0_34], %86 {strides = array<i32>} : memref<8x96xf32, #tpu.memory_space<vmem>>, vector<8x96xf32>,
    %88 = tpu.concatenate %36, %34, %73, %71 in 1 : vector<8x32xf32>, vector<8x32xf32>, vector<8x32xf32>, vector<8x32xf32> -> vector<8x128xf32>
    %c0_35 = arith.constant 0 : index
    %c0_36 = arith.constant 0 : index
    %89 = vector.load %arg7[%c0_35, %c0_36] : memref<8x128xf32, #tpu.memory_space<vmem>>, vector<8x128xf32>
    tpu.vector_store %arg7[%c0_35, %c0_36], %88 {strides = array<i32>} : memref<8x128xf32, #tpu.memory_space<vmem>>, vector<8x128xf32>,
    return
  }
  func.func @transform_0(%arg0: i32) -> (i32, i32) {
    %c0_i32 = arith.constant 0 : i32
    %c0_i32_0 = arith.constant 0 : i32
    return %arg0, %c0_i32 : i32, i32
  }
  func.func @transform_1(%arg0: i32) -> (i32, i32) {
    %c0_i32 = arith.constant 0 : i32
    %c0_i32_0 = arith.constant 0 : i32
    %c0_i32_1 = arith.constant 0 : i32
    return %c0_i32, %c0_i32_0 : i32, i32
  }
  func.func @transform_2(%arg0: i32) -> (i32, i32, i32) {
    %c0_i32 = arith.constant 0 : i32
    %c0_i32_0 = arith.constant 0 : i32
    %c0_i32_1 = arith.constant 0 : i32
    %c0_i32_2 = arith.constant 0 : i32
    return %c0_i32, %c0_i32_0, %c0_i32_1 : i32, i32, i32
  }
  func.func @transform_3(%arg0: i32) -> (i32, i32) {
    %c0_i32 = arith.constant 0 : i32
    %c0_i32_0 = arith.constant 0 : i32
    %c0_i32_1 = arith.constant 0 : i32
    return %c0_i32, %c0_i32_0 : i32, i32
  }
  func.func @transform_4(%arg0: i32) -> (i32, i32, i32) {
    %c0_i32 = arith.constant 0 : i32
    %c0_i32_0 = arith.constant 0 : i32
    %c0_i32_1 = arith.constant 0 : i32
    return %c0_i32, %arg0, %c0_i32_0 : i32, i32, i32
  }
  func.func @transform_5(%arg0: i32) -> (i32, i32) {
    %c0_i32 = arith.constant 0 : i32
    %c0_i32_0 = arith.constant 0 : i32
    return %arg0, %c0_i32 : i32, i32
  }
  func.func @transform_6(%arg0: i32) -> (i32, i32) {
    %c0_i32 = arith.constant 0 : i32
    %c0_i32_0 = arith.constant 0 : i32
    return %arg0, %c0_i32 : i32, i32
  }
}

</mosaic_0001>

<llo_original>
// kernel: tpu_custom_call.1
$region0: #{tpu_custom_call.1}
  #allocation0 [shape = 'u32[]', space=smem, size = 0x4, offset = 0x4, fixed_abs, tag = 'smem constant byte address 0x4 - core index']
  #allocation1 [shape = 'u32[144,128]{1,0:T(1,128)}', space=vmem, size = 0x12000, scoped, tag = 'internal scratch']
  %s0 = inlined_call_operand.hbm [shape: f32[16,48], index: 0, kind: input, shape index: {}]
  %s1 = inlined_call_operand.vmem [shape: f32[49,128], index: 1, kind: input, shape index: {}]
  %s2 = inlined_call_operand.vmem [shape: f32[1,65,128], index: 2, kind: input, shape index: {}]
  %s3 = inlined_call_operand.vmem [shape: f32[33,64], index: 3, kind: input, shape index: {}]
  %s4 = inlined_call_operand.vmem [shape: f32[2,16,64], index: 4, kind: input, shape index: {}]
  %s5 = inlined_call_operand.hbm [shape: f32[16,96], index: 5, kind: output, shape index: {0}]
  %s6 = inlined_call_operand.hbm [shape: f32[16,128], index: 6, kind: output, shape index: {1}]
  %7 = xla_tuple %s5, %s6
  %s8 = sld [smem:[#allocation0]]
  $region103: #{tpu_custom_call.1} parent=0
    _
  %s10 = ssub.s32 1, %s8
  %s11 = scalar_select 0, %s10, %s8
  $region1: #{tpu_custom_call.1} parent=0
    #allocation2 [shape = 'u8[8192]{0}', space=vmem, size = 0x2000, scoped, tag = 'input window, operand 0']
    #allocation3 [shape = 's32[2]{0}', space=sflag, size = 0x8, scoped, tag = 'scoped memory for tpu_custom_call.1']
    #allocation4 [shape = 's32[2]{0}', space=sflag, size = 0x8, scoped, tag = 'scoped memory for tpu_custom_call.1']
    #allocation5 [shape = 'u8[16384]{0}', space=vmem, size = 0x4000, scoped, tag = 'input window, operand 4']
    #allocation6 [shape = 'u8[8192]{0}', space=vmem, size = 0x2000, scoped, tag = 'output window, operand 0']
    #allocation7 [shape = 'u8[8192]{0}', space=vmem, size = 0x2000, scoped, tag = 'output window, operand 1']
    #allocation8 [shape = 's32[2]{0}', space=sflag, size = 0x8, scoped, tag = 'scoped memory for tpu_custom_call.1']
    %12 = vsyncpa [#allocation3], 0
    %s13 = scalar_lea.sflag [#allocation3], 1
    %14 = vsyncpa %s13, 0
    %15 = vsyncpa [#allocation4], 0
    %s16 = scalar_lea.sflag [#allocation4], 1
    %17 = vsyncpa %s16, 0
    %18 = vsyncpa [#allocation8], 0
    %s19 = scalar_lea.sflag [#allocation8], 1
    %20 = vsyncpa %s19, 0
    loop: start=0, step=1, limit=4
    $region2: #{tpu_custom_call.1} parent=1 // loop_pre_header
      _
    $region3: #{tpu_custom_call.1} parent=1 // loop_header
      %s22 = sphi 0, %s26
      %p23 = scmp.ge.s32.totalorder %s22, 4
      %s32 = sphi 0, %s34
      %s35 = sphi 0, %s32
      %s36 = sphi 0, %s35
      %s52 = sphi 0, %s36
      %s56 = sphi 0, %s56
      %s58 = sphi 0, %s56
      %s59 = sphi 0, %s58
      %s73 = sphi 0, %s59
      %s77 = sphi 0, %s77
      %s79 = sphi 0, %s77
      %s80 = sphi 0, %s79
      %s94 = sphi 0, %s80
      %s98 = sphi 0, %s98
      %s100 = sphi 0, %s98
      %s101 = sphi 0, %s100
      %s115 = sphi 0, %s101
      %s121 = sphi 0, %s123
      %s124 = sphi 0, %s121
      %s125 = sphi 0, %s124
      %s141 = sphi 0, %s125
      %s147 = sphi 0, %s149
      %s150 = sphi 0, %s147
      %s151 = sphi 0, %s150
      %s167 = sphi 0, %s151
      %s173 = sphi 0, %s175
      %s176 = sphi 0, %s173
      %s177 = sphi 0, %s176
      %s193 = sphi 0, %s177
    $region4: #{tpu_custom_call.1} parent=1 // loop_header_branch
      %25 = sbr.rel (%p23) target = $region8
    $region5: #{tpu_custom_call.1} parent=1 // loop_body
      %s27 = ssub.s32 %s22, 1
      %s28 = ssub.s32 %s22, 2
      %s29 = sadd.s32 %s22, 1
      %s30 = ssub.s32 %s22, %s29
      %p31 = scmp.eq.s32.totalorder %s30, 0
      %s33 = sadd.s32 %s32, 1
      %s34 = scalar_select %p31, %s32, %s33
      %p37 = pneg %p31
      %p38 = scmp.eq.s32.totalorder %s22, 1
      %p39 = por %p37, %p38
      %p40 = scmp.ne.s32.totalorder %s32, %s35
      %p41 = scmp.eq.s32.totalorder %s22, 0
      %p42 = por %p40, %p41
      %p43 = scmp.ne.s32.totalorder %s32, %s35
      %p44 = scmp.eq.s32.totalorder %s27, 1
      %p45 = por %p43, %p44
      %p46 = scmp.ne.s32.totalorder %s35, %s36
      %p47 = scmp.eq.s32.totalorder %s27, 0
      %p48 = por %p46, %p47
      %p49 = scmp.ne.s32.totalorder %s35, %s36
      %p50 = scmp.eq.s32.totalorder %s28, 1
      %p51 = por %p49, %p50
      %p53 = scmp.ne.s32.totalorder %s36, %s52
      %p54 = scmp.eq.s32.totalorder %s28, 0
      %p55 = por %p53, %p54
      %s57 = sadd.s32 %s56, 1
      %p60 = scmp.eq.s32.totalorder %s22, 1
      %p61 = scmp.ne.s32.totalorder %s56, %s58
      %p62 = scmp.eq.s32.totalorder %s22, 0
      %p63 = por %p61, %p62
      %p64 = scmp.ne.s32.totalorder %s56, %s58
      %p65 = scmp.eq.s32.totalorder %s27, 1
      %p66 = por %p64, %p65
      %p67 = scmp.ne.s32.totalorder %s58, %s59
      %p68 = scmp.eq.s32.totalorder %s27, 0
      %p69 = por %p67, %p68
      %p70 = scmp.ne.s32.totalorder %s58, %s59
      %p71 = scmp.eq.s32.totalorder %s28, 1
      %p72 = por %p70, %p71
      %p74 = scmp.ne.s32.totalorder %s59, %s73
      %p75 = scmp.eq.s32.totalorder %s28, 0
      %p76 = por %p74, %p75
      %s78 = sadd.s32 %s77, 1
      %p81 = scmp.eq.s32.totalorder %s22, 1
      %p82 = scmp.ne.s32.totalorder %s77, %s79
      %p83 = scmp.eq.s32.totalorder %s22, 0
      %p84 = por %p82, %p83
      %p85 = scmp.ne.s32.totalorder %s77, %s79
      %p86 = scmp.eq.s32.totalorder %s27, 1
      %p87 = por %p85, %p86
      %p88 = scmp.ne.s32.totalorder %s79, %s80
      %p89 = scmp.eq.s32.totalorder %s27, 0
      %p90 = por %p88, %p89
      %p91 = scmp.ne.s32.totalorder %s79, %s80
      %p92 = scmp.eq.s32.totalorder %s28, 1
      %p93 = por %p91, %p92
      %p95 = scmp.ne.s32.totalorder %s80, %s94
      %p96 = scmp.eq.s32.totalorder %s28, 0
      %p97 = por %p95, %p96
      %s99 = sadd.s32 %s98, 1
      %p102 = scmp.eq.s32.totalorder %s22, 1
      %p103 = scmp.ne.s32.totalorder %s98, %s100
      %p104 = scmp.eq.s32.totalorder %s22, 0
      %p105 = por %p103, %p104
      %p106 = scmp.ne.s32.totalorder %s98, %s100
      %p107 = scmp.eq.s32.totalorder %s27, 1
      %p108 = por %p106, %p107
      %p109 = scmp.ne.s32.totalorder %s100, %s101
      %p110 = scmp.eq.s32.totalorder %s27, 0
      %p111 = por %p109, %p110
      %p112 = scmp.ne.s32.totalorder %s100, %s101
      %p113 = scmp.eq.s32.totalorder %s28, 1
      %p114 = por %p112, %p113
      %p116 = scmp.ne.s32.totalorder %s101, %s115
      %p117 = scmp.eq.s32.totalorder %s28, 0
      %p118 = por %p116, %p117
      %s119 = ssub.s32 %s22, %s29
      %p120 = scmp.eq.s32.totalorder %s119, 0
      %s122 = sadd.s32 %s121, 1
      %s123 = scalar_select %p120, %s121, %s122
      %p126 = pneg %p120
      %p127 = scmp.eq.s32.totalorder %s22, 1
      %p128 = por %p126, %p127
      %p129 = scmp.ne.s32.totalorder %s121, %s124
      %p130 = scmp.eq.s32.totalorder %s22, 0
      %p131 = por %p129, %p130
      %p132 = scmp.ne.s32.totalorder %s121, %s124
      %p133 = scmp.eq.s32.totalorder %s27, 1
      %p134 = por %p132, %p133
      %p135 = scmp.ne.s32.totalorder %s124, %s125
      %p136 = scmp.eq.s32.totalorder %s27, 0
      %p137 = por %p135, %p136
      %p138 = scmp.ne.s32.totalorder %s124, %s125
      %p139 = scmp.eq.s32.totalorder %s28, 1
      %p140 = por %p138, %p139
      %p142 = scmp.ne.s32.totalorder %s125, %s141
      %p143 = scmp.eq.s32.totalorder %s28, 0
      %p144 = por %p142, %p143
      %s145 = ssub.s32 %s22, %s29
      %p146 = scmp.eq.s32.totalorder %s145, 0
      %s148 = sadd.s32 %s147, 1
      %s149 = scalar_select %p146, %s147, %s148
      %p152 = pneg %p146
      %p153 = scmp.eq.s32.totalorder %s22, 1
      %p154 = por %p152, %p153
      %p155 = scmp.ne.s32.totalorder %s147, %s150
      %p156 = scmp.eq.s32.totalorder %s22, 0
      %p157 = por %p155, %p156
      %p158 = scmp.ne.s32.totalorder %s147, %s150
      %p159 = scmp.eq.s32.totalorder %s27, 1
      %p160 = por %p158, %p159
      %p161 = scmp.ne.s32.totalorder %s150, %s151
      %p162 = scmp.eq.s32.totalorder %s27, 0
      %p163 = por %p161, %p162
      %p164 = scmp.ne.s32.totalorder %s150, %s151
      %p165 = scmp.eq.s32.totalorder %s28, 1
      %p166 = por %p164, %p165
      %p168 = scmp.ne.s32.totalorder %s151, %s167
      %p169 = scmp.eq.s32.totalorder %s28, 0
      %p170 = por %p168, %p169
      %s171 = ssub.s32 %s22, %s29
      %p172 = scmp.eq.s32.totalorder %s171, 0
      %s174 = sadd.s32 %s173, 1
      %s175 = scalar_select %p172, %s173, %s174
      %p178 = pneg %p172
      %p179 = scmp.eq.s32.totalorder %s22, 1
      %p180 = por %p178, %p179
      %p181 = scmp.ne.s32.totalorder %s173, %s176
      %p182 = scmp.eq.s32.totalorder %s22, 0
      %p183 = por %p181, %p182
      %p184 = scmp.ne.s32.totalorder %s173, %s176
      %p185 = scmp.eq.s32.totalorder %s27, 1
      %p186 = por %p184, %p185
      %p187 = scmp.ne.s32.totalorder %s176, %s177
      %p188 = scmp.eq.s32.totalorder %s27, 0
      %p189 = por %p187, %p188
      %p190 = scmp.ne.s32.totalorder %s176, %s177
      %p191 = scmp.eq.s32.totalorder %s28, 1
      %p192 = por %p190, %p191
      %p194 = scmp.ne.s32.totalorder %s177, %s193
      %p195 = scmp.eq.s32.totalorder %s28, 0
      %p196 = por %p194, %p195
      %p197 = scmp.le.s32.totalorder 1, %s22
      %p198 = scmp.lt.s32.totalorder %s22, 3
      %p199 = pnand %p197, %p198
      %p200 = pneg %p199
      // Predicated region
      $region9: #{tpu_custom_call.1} parent=5 // pred_check
        _
      $region10: #{tpu_custom_call.1} parent=5 // pred_check_branch
        %202 = sbr.rel (%p199) target = $region12
      $region11: #{tpu_custom_call.1} parent=5 // pred_region
        %s203 = ssub.s32 %s22, 1
        // Predicated region
        $region13: #{tpu_custom_call.1} parent=11 // pred_check
          %p204 = pneg %p69
        $region14: #{tpu_custom_call.1} parent=11 // pred_check_branch
          %206 = sbr.rel (%p204) target = $region16
        $region15: #{tpu_custom_call.1} parent=11 // pred_region
          _
        $region16: #{tpu_custom_call.1} parent=11 // pred_fallthru
          _
        // Predicated region
        $region17: #{tpu_custom_call.1} parent=11 // pred_check
          %p207 = pneg %p90
        $region18: #{tpu_custom_call.1} parent=11 // pred_check_branch
          %209 = sbr.rel (%p207) target = $region20
        $region19: #{tpu_custom_call.1} parent=11 // pred_region
          _
        $region20: #{tpu_custom_call.1} parent=11 // pred_fallthru
          _
        // Predicated region
        $region21: #{tpu_custom_call.1} parent=11 // pred_check
          %p210 = pneg %p111
        $region22: #{tpu_custom_call.1} parent=11 // pred_check_branch
          %212 = sbr.rel (%p210) target = $region24
        $region23: #{tpu_custom_call.1} parent=11 // pred_region
          _
        $region24: #{tpu_custom_call.1} parent=11 // pred_fallthru
          _
      $region12: #{tpu_custom_call.1} parent=5 // pred_fallthru
        _
      %p213 = scmp.lt.s32.totalorder %s22, 2
      // Predicated region
      $region25: #{tpu_custom_call.1} parent=5 // pred_check
        %p214 = pneg %p213
      $region26: #{tpu_custom_call.1} parent=5 // pred_check_branch
        %216 = sbr.rel (%p214) target = $region28
      $region27: #{tpu_custom_call.1} parent=5 // pred_region
        // Predicated region
        $region29: #{tpu_custom_call.1} parent=27 // pred_check
          %p217 = pneg %p42
        $region30: #{tpu_custom_call.1} parent=27 // pred_check_branch
          %219 = sbr.rel (%p217) target = $region32
        $region31: #{tpu_custom_call.1} parent=27 // pred_region
          %s220 = sand.u32 %s32, 1
          %s221 = scalar_lea.sflag [#allocation3], %s220
          %s222 = sand.u32 %s32, 1
          %s223 = smul.addr %s222, 8
          %s224 = scalar_lea.vmem [#allocation2], %s223
          %s226 = ssub.s32 128, 128
          %227 = vsyncadd %s221, %s226
          %s228 = smul.addr %s22, 128
          %s229 = scalar_lea.hbm %s0, %s228
          %s231 = sshll.u32 %s224, 4
          %s232 = int_to_ptr.vmem [resolvable:$true] %s231
          %234 = dma.hbm_to_vmem [thread:$0]  %s229, 128, %s232, %s221
        $region32: #{tpu_custom_call.1} parent=27 // pred_fallthru
          _
        // Predicated region
        $region33: #{tpu_custom_call.1} parent=27 // pred_check
          %p235 = pneg %p131
        $region34: #{tpu_custom_call.1} parent=27 // pred_check_branch
          %237 = sbr.rel (%p235) target = $region36
        $region35: #{tpu_custom_call.1} parent=27 // pred_region
          %s238 = sand.u32 %s121, 1
          %s239 = sand.u32 %s121, 1
          %s240 = smul.addr %s239, 16
          %s241 = scalar_lea.vmem [#allocation5], %s240
          %s242 = smul.addr %s22, 8
          %s243 = scalar_lea.vmem %s4, %s242
          // Predicated region
          $region37: #{tpu_custom_call.1} parent=35 // pred_check
            _
          $region38: #{tpu_custom_call.1} parent=35 // pred_check_branch
            %245 = sbr.rel (0) target = $region40
          $region39: #{tpu_custom_call.1} parent=35 // pred_region
            // Predicated region
            $region41: #{tpu_custom_call.1} parent=39 // pred_check
              _
            $region42: #{tpu_custom_call.1} parent=39 // pred_check_branch
              %247 = sbr.rel (0) target = $region44
            $region43: #{tpu_custom_call.1} parent=39 // pred_region
              // Predicated region
              $region56: #{tpu_custom_call.1} parent=43 // pred_check
                _
              $region57: #{tpu_custom_call.1} parent=43 // pred_check_branch
                %264 = sbr.rel (0) target = $region59
              $region58: #{tpu_custom_call.1} parent=43 // pred_region
                loop: start=0, step=1, limit=1
                $region60: #{tpu_custom_call.1} parent=58 // loop_pre_header
                  _
                $region61: #{tpu_custom_call.1} parent=58 // loop_header
                  %s266 = sphi 0, %s270
                  %p267 = scmp.ge.s32.totalorder %s266, 1
                  %s271 = sphi %s243, %s243
                  %s272 = sphi %s241, %s241
                $region62: #{tpu_custom_call.1} parent=58 // loop_header_branch
                  %269 = sbr.rel (%p267) target = $region66
                $region63: #{tpu_custom_call.1} parent=58 // loop_body
                  %v273 = vld [vmem:[%s271] sm:$0xff]
                  %274 = vst [vmem:[%s272] sm:$0xff] %v273
                  %v275 = vld [vmem:[%s271 + $0x10] sm:$0xff]
                  %276 = vst [vmem:[%s272 + $0x8] sm:$0xff] %v275
                $region64: #{tpu_custom_call.1} parent=58 // loop_footer
                  %s270 = sadd.s32 1, %s266
                $region65: #{tpu_custom_call.1} parent=58 // loop_footer_branch
                  %265 = sbr.rel target = $region61
                $region66: #{tpu_custom_call.1} parent=58 // loop_exit
                  _
              $region59: #{tpu_custom_call.1} parent=43 // pred_fallthru
                _
              // Predicated region
              $region67: #{tpu_custom_call.1} parent=43 // pred_check
                _
              $region68: #{tpu_custom_call.1} parent=43 // pred_check_branch
                %278 = sbr.rel target = $region70
              $region69: #{tpu_custom_call.1} parent=43 // pred_region
                _
              $region70: #{tpu_custom_call.1} parent=43 // pred_fallthru
                _
            $region44: #{tpu_custom_call.1} parent=39 // pred_fallthru
              _
            // Predicated region
            $region45: #{tpu_custom_call.1} parent=39 // pred_check
              _
            $region46: #{tpu_custom_call.1} parent=39 // pred_check_branch
              %249 = sbr.rel target = $region48
            $region47: #{tpu_custom_call.1} parent=39 // pred_region
              loop: start=0, step=1, limit=1
              $region49: #{tpu_custom_call.1} parent=47 // loop_pre_header
                _
              $region50: #{tpu_custom_call.1} parent=47 // loop_header
                %s252 = sphi 0, %s256
                %p253 = scmp.ge.s32.totalorder %s252, 1
                %s257 = sphi %s243, %s243
                %s258 = sphi %s241, %s241
              $region51: #{tpu_custom_call.1} parent=47 // loop_header_branch
                %255 = sbr.rel (%p253) target = $region55
              $region52: #{tpu_custom_call.1} parent=47 // loop_body
                %v259 = vld [vmem:[%s257] sm:$0xff]
                %260 = vst [vmem:[%s258] sm:$0xff] %v259
                %v261 = vld [vmem:[%s257 + $0x10] sm:$0xff]
                %262 = vst [vmem:[%s258 + $0x8] sm:$0xff] %v261
              $region53: #{tpu_custom_call.1} parent=47 // loop_footer
                %s256 = sadd.s32 1, %s252
              $region54: #{tpu_custom_call.1} parent=47 // loop_footer_branch
                %251 = sbr.rel target = $region50
              $region55: #{tpu_custom_call.1} parent=47 // loop_exit
                _
            $region48: #{tpu_custom_call.1} parent=39 // pred_fallthru
              _
          $region40: #{tpu_custom_call.1} parent=35 // pred_fallthru
            _
          %279 = vnop
        $region36: #{tpu_custom_call.1} parent=27 // pred_fallthru
          _
      $region28: #{tpu_custom_call.1} parent=5 // pred_fallthru
        _
      %p280 = scmp.le.s32.totalorder 1, %s22
      %p281 = scmp.lt.s32.totalorder %s22, 3
      %p282 = pnand %p280, %p281
      %p283 = pneg %p282
      // Predicated region
      $region71: #{tpu_custom_call.1} parent=5 // pred_check
        _
      $region72: #{tpu_custom_call.1} parent=5 // pred_check_branch
        %285 = sbr.rel (%p282) target = $region74
      $region73: #{tpu_custom_call.1} parent=5 // pred_region
        %s286 = ssub.s32 %s22, 1
        %s287 = sand.u32 %s35, 1
        %s288 = scalar_lea.sflag [#allocation3], %s287
        %s289 = sand.u32 %s35, 1
        %s290 = smul.addr %s289, 8
        %s291 = scalar_lea.vmem [#allocation2], %s290
        // Predicated region
        $region75: #{tpu_custom_call.1} parent=73 // pred_check
          %p292 = pneg %p48
        $region76: #{tpu_custom_call.1} parent=73 // pred_check_branch
          %294 = sbr.rel (%p292) target = $region78
        $region77: #{tpu_custom_call.1} parent=73 // pred_region
          %295 = dma.done %s288, 128
        $region78: #{tpu_custom_call.1} parent=73 // pred_fallthru
          _
        %s296 = sand.u32 %s124, 1
        %s297 = sand.u32 %s124, 1
        %s298 = smul.addr %s297, 16
        %s299 = scalar_lea.vmem [#allocation5], %s298
        // Predicated region
        $region79: #{tpu_custom_call.1} parent=73 // pred_check
          %p300 = pneg %p137
        $region80: #{tpu_custom_call.1} parent=73 // pred_check_branch
          %302 = sbr.rel (%p300) target = $region82
        $region81: #{tpu_custom_call.1} parent=73 // pred_region
          _
        $region82: #{tpu_custom_call.1} parent=73 // pred_fallthru
          _
        %s303 = sand.u32 %s35, 1
        %s304 = scalar_lea.sflag [#allocation3], %s303
        %s305 = sand.u32 %s35, 1
        %s306 = smul.addr %s305, 8
        %s307 = scalar_lea.vmem [#allocation2], %s306
        %p308 = pneg %p48
        %p309 = pneg %p45
        %p310 = pneg %p69
        %p311 = pneg %p66
        %p312 = pneg %p90
        %p313 = pneg %p87
        %p314 = pneg %p111
        %p315 = pneg %p108
        %s316 = sand.u32 %s124, 1
        %s317 = sand.u32 %s124, 1
        %s318 = smul.addr %s317, 16
        %s319 = scalar_lea.vmem [#allocation5], %s318
        %p320 = pneg %p137
        %p321 = pneg %p134
        %p322 = pneg %p163
        %p323 = pneg %p160
        %s324 = sand.u32 %s150, 1
        %s325 = scalar_lea.sflag [#allocation4], %s324
        %s326 = sand.u32 %s150, 1
        %s327 = smul.addr %s326, 8
        %s328 = scalar_lea.vmem [#allocation6], %s327
        %p329 = pneg %p189
        %p330 = pneg %p186
        %s331 = sand.u32 %s176, 1
        %s332 = scalar_lea.sflag [#allocation8], %s331
        %s333 = sand.u32 %s176, 1
        %s334 = smul.addr %s333, 8
        %s335 = scalar_lea.vmem [#allocation7], %s334
        %v336 = vld [vmem:[%s291] sm:$0xff]
        %v337 = vld [vmem:[%s299] sm:$0xff]
        %339 = vrot.lane.b32.xlu0 %v337, 16
        %v340 = vpop.permute.xlu0 %339
        %vm342 = vcmask 130048
        %v343 = vsel %vm342, %v336, %v340
        %v344 = vld [vmem:[%s1] sm:$0xff]
        %v345 = vld [vmem:[%s1 + $0x8] sm:$0xff]
        %v346 = vld [vmem:[%s1 + $0x10] sm:$0xff]
        %v347 = vld [vmem:[%s1 + $0x18] sm:$0xff]
        %v348 = vld [vmem:[%s1 + $0x20] sm:$0xff]
        %v349 = vld [vmem:[%s1 + $0x28] sm:$0xff]
        %v350 = vld [vmem:[%s1 + $0x30] sm:$0x1]
        %v351 = vlaneseq
        %v352 = vshrl.u32 %v351, 7
        %v353 = vsub.s32 0, %v352
        %v354 = vrot.slane %v350, %v353
        %vm355 = vcmask 392192
        %v357 = vsel %vm355, %v343, 0
        %359 = vmatprep.subr.mxu0 0.0
        %360 = vmatpush1.msra.mxu0 %v344
        %361 = vmatprep.subr.mxu0 0.0
        %362 = vmatpush1.msra.mxu0 %v345
        %363 = vmatprep.subr.mxu0 0.0
        %364 = vmatpush1.msra.mxu0 %v346
        %365 = vmatprep.subr.mxu0 0.0
        %366 = vmatpush1.msra.mxu0 %v347
        %367 = vmatprep.subr.mxu0 0.0
        %368 = vmatpush1.msra.mxu0 %v348
        %369 = vmatprep.subr.mxu0 0.0
        %370 = vmatpush1.msra.mxu0 %v349
        %371 = vmatprep.subr.mxu0 0.0
        %372 = vmatpush1.msra.mxu0 0.0
        %373 = vmatprep.subr.mxu0 0.0
        %374 = vmatpush1.msra.mxu0 0.0
        %375 = vmatprep.subr.mxu0 0.0
        %376 = vmatpush1.msra.mxu0 0.0
        %377 = vmatprep.subr.mxu0 0.0
        %378 = vmatpush1.msra.mxu0 0.0
        %379 = vmatprep.subr.mxu0 0.0
        %380 = vmatpush1.msra.mxu0 0.0
        %381 = vmatprep.subr.mxu0 0.0
        %382 = vmatpush1.msra.mxu0 0.0
        %383 = vmatprep.subr.mxu0 0.0
        %384 = vmatpush1.msra.mxu0 0.0
        %385 = vmatprep.subr.mxu0 0.0
        %386 = vmatpush1.msra.mxu0 0.0
        %387 = vmatprep.subr.mxu0 0.0
        %388 = vmatpush1.msra.mxu0 0.0
        %389 = vmatprep.subr.mxu0 0.0
        %390 = vmatpush1.msra.mxu0 0.0
        %391 = vmatprep.subr.mxu0 0.0
        %392 = vmatpush1.msra.mxu0 0.0
        %393 = vmatprep.subr.mxu0 0.0
        %394 = vmatpush1.msra.mxu0 0.0
        %395 = vmatprep.subr.mxu0 0.0
        %396 = vmatpush1.msra.mxu0 0.0
        %397 = vmatprep.subr.mxu0 0.0
        %398 = vmatpush1.msra.mxu0 0.0
        %399 = vmatprep.subr.mxu0 0.0
        %400 = vmatpush1.msra.mxu0 0.0
        %401 = vmatprep.subr.mxu0 0.0
        %402 = vmatpush1.msra.mxu0 0.0
        %403 = vmatprep.subr.mxu0 0.0
        %404 = vmatpush1.msra.mxu0 0.0
        %405 = vmatprep.subr.mxu0 0.0
        %406 = vmatpush1.msra.mxu0 0.0
        %407 = vmatprep.subr.mxu0 0.0
        %408 = vmatpush1.msra.mxu0 0.0
        %409 = vmatprep.subr.mxu0 0.0
        %410 = vmatpush1.msra.mxu0 0.0
        %411 = vmatprep.subr.mxu0 0.0
        %412 = vmatpush1.msra.mxu0 0.0
        %413 = vmatprep.subr.mxu0 0.0
        %414 = vmatpush1.msra.mxu0 0.0
        %415 = vmatprep.subr.mxu0 0.0
        %416 = vmatpush1.msra.mxu0 0.0
        %417 = vmatprep.subr.mxu0 0.0
        %418 = vmatpush1.msra.mxu0 0.0
        %419 = vmatprep.subr.mxu0 0.0
        %420 = vmatpush1.msra.mxu0 0.0
        %421 = vmatprep.subr.mxu0 0.0
        %422 = vmatpush1.msra.mxu0 0.0
        %423 = vmatprep.mubr.f32.mxu0 0.0
        %424 = vmatmul.mubr.f32.gmra.mrb[0].mxu0 %v357
        %v425 = vpop.f32.mrb[0].mxu0
        %v426 = vadd.f32 %v354, %v425
        %v427 = vpop.f32.mrb[0].mxu0
        %428 = vdwg.mxu0
        %v429 = vxor.u32 %v426, 2147483648
        %v430 = vmul.f32 %v429, 1.442695
        %v431 = vpow.pop %v430
        %v432 = vadd.f32 %v431, 1.0
        %v433 = vrcp.pop %v432
        %v434 = vmul.f32 1.0, %v433
        %v435 = vtanh.pop %v426
        %v436 = vmul.f32 %v434, %v337
        %438 = vrot.lane.b32.xlu0 %v435, 64
        %v439 = vpop.permute.xlu0 %438
        %v441 = vmul.f32 %v434, %v439
        %443 = vrot.lane.b32.xlu0 %v441, 32
        %v444 = vpop.permute.xlu0 %443
        %v446 = vadd.f32 %v436, %v444
        %v447 = vtanh.pop %v446
        %449 = vrot.lane.b32.xlu0 %v447, 64
        %v450 = vpop.permute.xlu0 %449
        %v452 = vmul.f32 %v434, %v450
        %s453 = scalar_lea.vmem %s299, 8 [#allocation5]
        %v454 = vld [vmem:[%s453] sm:$0xff]
        %456 = vrot.lane.b32.xlu0 %v452, 32
        %v457 = vpop.permute.xlu0 %456
        %460 = vrot.lane.b32.xlu0 %v454, 32
        %v461 = vpop.permute.xlu0 %460
        %vm463 = vcmask 261120
        %v464 = vsel %vm463, %v457, %v461
        %v465 = vld [vmem:[%s2] sm:$0xff]
        %v466 = vld [vmem:[%s2 + $0x8] sm:$0xff]
        %v467 = vld [vmem:[%s2 + $0x10] sm:$0xff]
        %v468 = vld [vmem:[%s2 + $0x18] sm:$0xff]
        %v469 = vld [vmem:[%s2 + $0x20] sm:$0xff]
        %v470 = vld [vmem:[%s2 + $0x28] sm:$0xff]
        %v471 = vld [vmem:[%s2 + $0x30] sm:$0xff]
        %v472 = vld [vmem:[%s2 + $0x38] sm:$0xff]
        %v473 = vld [vmem:[%s2 + $0x40] sm:$0x1]
        %v474 = vlaneseq
        %v475 = vshrl.u32 %v474, 7
        %v476 = vsub.s32 0, %v475
        %v477 = vrot.slane %v473, %v476
        %vm478 = vcmask 523264
        %v480 = vsel %vm478, %v464, 0
        %482 = vmatprep.subr.mxu0 0.0
        %483 = vmatpush1.msra.mxu0 %v465
        %484 = vmatprep.subr.mxu0 0.0
        %485 = vmatpush1.msra.mxu0 %v466
        %486 = vmatprep.subr.mxu0 0.0
        %487 = vmatpush1.msra.mxu0 %v467
        %488 = vmatprep.subr.mxu0 0.0
        %489 = vmatpush1.msra.mxu0 %v468
        %490 = vmatprep.subr.mxu0 0.0
        %491 = vmatpush1.msra.mxu0 %v469
        %492 = vmatprep.subr.mxu0 0.0
        %493 = vmatpush1.msra.mxu0 %v470
        %494 = vmatprep.subr.mxu0 0.0
        %495 = vmatpush1.msra.mxu0 %v471
        %496 = vmatprep.subr.mxu0 0.0
        %497 = vmatpush1.msra.mxu0 %v472
        %498 = vmatprep.subr.mxu0 0.0
        %499 = vmatpush1.msra.mxu0 0.0
        %500 = vmatprep.subr.mxu0 0.0
        %501 = vmatpush1.msra.mxu0 0.0
        %502 = vmatprep.subr.mxu0 0.0
        %503 = vmatpush1.msra.mxu0 0.0
        %504 = vmatprep.subr.mxu0 0.0
        %505 = vmatpush1.msra.mxu0 0.0
        %506 = vmatprep.subr.mxu0 0.0
        %507 = vmatpush1.msra.mxu0 0.0
        %508 = vmatprep.subr.mxu0 0.0
        %509 = vmatpush1.msra.mxu0 0.0
        %510 = vmatprep.subr.mxu0 0.0
        %511 = vmatpush1.msra.mxu0 0.0
        %512 = vmatprep.subr.mxu0 0.0
        %513 = vmatpush1.msra.mxu0 0.0
        %514 = vmatprep.subr.mxu0 0.0
        %515 = vmatpush1.msra.mxu0 0.0
        %516 = vmatprep.subr.mxu0 0.0
        %517 = vmatpush1.msra.mxu0 0.0
        %518 = vmatprep.subr.mxu0 0.0
        %519 = vmatpush1.msra.mxu0 0.0
        %520 = vmatprep.subr.mxu0 0.0
        %521 = vmatpush1.msra.mxu0 0.0
        %522 = vmatprep.subr.mxu0 0.0
        %523 = vmatpush1.msra.mxu0 0.0
        %524 = vmatprep.subr.mxu0 0.0
        %525 = vmatpush1.msra.mxu0 0.0
        %526 = vmatprep.subr.mxu0 0.0
        %527 = vmatpush1.msra.mxu0 0.0
        %528 = vmatprep.subr.mxu0 0.0
        %529 = vmatpush1.msra.mxu0 0.0
        %530 = vmatprep.subr.mxu0 0.0
        %531 = vmatpush1.msra.mxu0 0.0
        %532 = vmatprep.subr.mxu0 0.0
        %533 = vmatpush1.msra.mxu0 0.0
        %534 = vmatprep.subr.mxu0 0.0
        %535 = vmatpush1.msra.mxu0 0.0
        %536 = vmatprep.subr.mxu0 0.0
        %537 = vmatpush1.msra.mxu0 0.0
        %538 = vmatprep.subr.mxu0 0.0
        %539 = vmatpush1.msra.mxu0 0.0
        %540 = vmatprep.subr.mxu0 0.0
        %541 = vmatpush1.msra.mxu0 0.0
        %542 = vmatprep.subr.mxu0 0.0
        %543 = vmatpush1.msra.mxu0 0.0
        %544 = vmatprep.subr.mxu0 0.0
        %545 = vmatpush1.msra.mxu0 0.0
        %546 = vmatprep.mubr.f32.mxu0 0.0
        %547 = vmatmul.mubr.f32.gmra.mrb[0].mxu0 %v480
        %v548 = vpop.f32.mrb[0].mxu0
        %v549 = vadd.f32 %v477, %v548
        %v550 = vpop.f32.mrb[0].mxu0
        %551 = vdwg.mxu0
        %v552 = vxor.u32 %v549, 2147483648
        %v553 = vmul.f32 %v552, 1.442695
        %v554 = vpow.pop %v553
        %v555 = vadd.f32 %v554, 1.0
        %v556 = vrcp.pop %v555
        %v557 = vmul.f32 1.0, %v556
        %v558 = vtanh.pop %v549
        %v559 = vmul.f32 %v557, %v454
        %561 = vrot.lane.b32.xlu0 %v558, 64
        %v562 = vpop.permute.xlu0 %561
        %v564 = vmul.f32 %v557, %v562
        %566 = vrot.lane.b32.xlu0 %v564, 32
        %v567 = vpop.permute.xlu0 %566
        %v569 = vadd.f32 %v559, %v567
        %v570 = vtanh.pop %v569
        %572 = vrot.lane.b32.xlu0 %v570, 64
        %v573 = vpop.permute.xlu0 %572
        %v575 = vmul.f32 %v557, %v573
        %v576 = vld [vmem:[%s3] sm:$0xff]
        %v577 = vld [vmem:[%s3 + $0x8] sm:$0xff]
        %v578 = vld [vmem:[%s3 + $0x10] sm:$0xff]
        %v579 = vld [vmem:[%s3 + $0x18] sm:$0xff]
        %v580 = vld [vmem:[%s3 + $0x20] sm:$0x1]
        %v581 = vlaneseq
        %v582 = vshrl.u32 %v581, 7
        %v583 = vsub.s32 0, %v582
        %v584 = vrot.slane %v580, %v583
        %586 = vrot.lane.b32.xlu0 %v575, 32
        %v587 = vpop.permute.xlu0 %586
        %v588 = vsel %vm463, %v587, 0
        %590 = vmatprep.subr.mxu0 0.0
        %591 = vmatpush1.msra.mxu0 %v576
        %592 = vmatprep.subr.mxu0 0.0
        %593 = vmatpush1.msra.mxu0 %v577
        %594 = vmatprep.subr.mxu0 0.0
        %595 = vmatpush1.msra.mxu0 %v578
        %596 = vmatprep.subr.mxu0 0.0
        %597 = vmatpush1.msra.mxu0 %v579
        %598 = vmatprep.subr.mxu0 0.0
        %599 = vmatpush1.msra.mxu0 0.0
        %600 = vmatprep.subr.mxu0 0.0
        %601 = vmatpush1.msra.mxu0 0.0
        %602 = vmatprep.subr.mxu0 0.0
        %603 = vmatpush1.msra.mxu0 0.0
        %604 = vmatprep.subr.mxu0 0.0
        %605 = vmatpush1.msra.mxu0 0.0
        %606 = vmatprep.subr.mxu0 0.0
        %607 = vmatpush1.msra.mxu0 0.0
        %608 = vmatprep.subr.mxu0 0.0
        %609 = vmatpush1.msra.mxu0 0.0
        %610 = vmatprep.subr.mxu0 0.0
        %611 = vmatpush1.msra.mxu0 0.0
        %612 = vmatprep.subr.mxu0 0.0
        %613 = vmatpush1.msra.mxu0 0.0
        %614 = vmatprep.subr.mxu0 0.0
        %615 = vmatpush1.msra.mxu0 0.0
        %616 = vmatprep.subr.mxu0 0.0
        %617 = vmatpush1.msra.mxu0 0.0
        %618 = vmatprep.subr.mxu0 0.0
        %619 = vmatpush1.msra.mxu0 0.0
        %620 = vmatprep.subr.mxu0 0.0
        %621 = vmatpush1.msra.mxu0 0.0
        %622 = vmatprep.subr.mxu0 0.0
        %623 = vmatpush1.msra.mxu0 0.0
        %624 = vmatprep.subr.mxu0 0.0
        %625 = vmatpush1.msra.mxu0 0.0
        %626 = vmatprep.subr.mxu0 0.0
        %627 = vmatpush1.msra.mxu0 0.0
        %628 = vmatprep.subr.mxu0 0.0
        %629 = vmatpush1.msra.mxu0 0.0
        %630 = vmatprep.subr.mxu0 0.0
        %631 = vmatpush1.msra.mxu0 0.0
        %632 = vmatprep.subr.mxu0 0.0
        %633 = vmatpush1.msra.mxu0 0.0
        %634 = vmatprep.subr.mxu0 0.0
        %635 = vmatpush1.msra.mxu0 0.0
        %636 = vmatprep.subr.mxu0 0.0
        %637 = vmatpush1.msra.mxu0 0.0
        %638 = vmatprep.subr.mxu0 0.0
        %639 = vmatpush1.msra.mxu0 0.0
        %640 = vmatprep.subr.mxu0 0.0
        %641 = vmatpush1.msra.mxu0 0.0
        %642 = vmatprep.subr.mxu0 0.0
        %643 = vmatpush1.msra.mxu0 0.0
        %644 = vmatprep.subr.mxu0 0.0
        %645 = vmatpush1.msra.mxu0 0.0
        %646 = vmatprep.subr.mxu0 0.0
        %647 = vmatpush1.msra.mxu0 0.0
        %648 = vmatprep.subr.mxu0 0.0
        %649 = vmatpush1.msra.mxu0 0.0
        %650 = vmatprep.subr.mxu0 0.0
        %651 = vmatpush1.msra.mxu0 0.0
        %652 = vmatprep.subr.mxu0 0.0
        %653 = vmatpush1.msra.mxu0 0.0
        %654 = vmatprep.mubr.f32.mxu0 0.0
        %655 = vmatmul.mubr.f32.gmra.mrb[0].mxu0 %v588
        %v656 = vpop.f32.mrb[0].mxu0
        %v657 = vadd.f32 %v584, %v656
        %v658 = vpop.f32.mrb[0].mxu0
        %659 = vdwg.mxu0
        %v660 = vmul.f32 %v657, 0.5
        %v661 = vmul.f32 %v660, 1.442695
        %v662 = vpow.pop %v661
        %664 = vrot.lane.b32.xlu0 %v662, 112
        %v665 = vpop.permute.xlu0 %664
        %v667 = vmul.f32 %v336, %v665
        %669 = vrot.lane.b32.xlu0 %v657, 16
        %v670 = vpop.permute.xlu0 %669
        %v672 = vadd.f32 %v667, %v670
        %674 = vrot.lane.b32.xlu0 %v672, 112
        %v675 = vpop.permute.xlu0 %674
        %677 = vrot.lane.b32.xlu0 %v657, 32
        %v678 = vpop.permute.xlu0 %677
        %v680 = vsel %vm463, %v675, %v678
        %v681 = vsel %vm478, %v680, %v678
        %vm682 = vcmask 785408
        %683 = vst.msk [vmem:[%s328] sm:$0xff] %vm682, %v681
        %684 = vrot.lane.b32.xlu0 %v575, 96
        %v685 = vpop.permute.xlu0 %684
        %688 = vrot.lane.b32.xlu0 %v569, 64
        %v689 = vpop.permute.xlu0 %688
        %v691 = vsel %vm463, %v457, %v446
        %v692 = vsel %vm478, %v691, %v685
        %v693 = vsel %vm682, %v692, %v689
        %694 = vst [vmem:[%s335] sm:$0xff] %v693
        %s695 = sand.u32 %s150, 1
        %s696 = scalar_lea.sflag [#allocation4], %s695
        %s697 = sand.u32 %s150, 1
        %s698 = smul.addr %s697, 8
        %s699 = scalar_lea.vmem [#allocation6], %s698
        %s700 = sand.u32 %s176, 1
        %s701 = scalar_lea.sflag [#allocation8], %s700
        %s702 = sand.u32 %s176, 1
        %s703 = smul.addr %s702, 8
        %s704 = scalar_lea.vmem [#allocation7], %s703
        // Predicated region
        $region83: #{tpu_custom_call.1} parent=73 // pred_check
          %p705 = pneg %p160
        $region84: #{tpu_custom_call.1} parent=73 // pred_check_branch
          %707 = sbr.rel (%p705) target = $region86
        $region85: #{tpu_custom_call.1} parent=73 // pred_region
          %s709 = ssub.s32 128, 128
          %710 = vsyncadd %s696, %s709
          %s711 = smul.addr %s27, 128
          %s712 = scalar_lea.hbm %s5, %s711
          %s714 = sshll.u32 %s699, 4
          %s715 = int_to_ptr.vmem [resolvable:$true] %s714
          %717 = dma.vmem_to_hbm [thread:$0]  %s715, 128, %s712, %s696
        $region86: #{tpu_custom_call.1} parent=73 // pred_fallthru
          _
        // Predicated region
        $region87: #{tpu_custom_call.1} parent=73 // pred_check
          %p718 = pneg %p186
        $region88: #{tpu_custom_call.1} parent=73 // pred_check_branch
          %720 = sbr.rel (%p718) target = $region90
        $region89: #{tpu_custom_call.1} parent=73 // pred_region
          %s722 = ssub.s32 128, 128
          %723 = vsyncadd %s701, %s722
          %s724 = smul.addr %s27, 128
          %s725 = scalar_lea.hbm %s6, %s724
          %s727 = sshll.u32 %s704, 4
          %s728 = int_to_ptr.vmem [resolvable:$true] %s727
          %730 = dma.vmem_to_hbm [thread:$0]  %s728, 128, %s725, %s701
        $region90: #{tpu_custom_call.1} parent=73 // pred_fallthru
          _
      $region74: #{tpu_custom_call.1} parent=5 // pred_fallthru
        _
      %p731 = scmp.le.s32.totalorder 2, %s22
      // Predicated region
      $region91: #{tpu_custom_call.1} parent=5 // pred_check
        %p732 = pneg %p731
      $region92: #{tpu_custom_call.1} parent=5 // pred_check_branch
        %734 = sbr.rel (%p732) target = $region94
      $region93: #{tpu_custom_call.1} parent=5 // pred_region
        %s735 = ssub.s32 %s22, 2
        // Predicated region
        $region95: #{tpu_custom_call.1} parent=93 // pred_check
          %p736 = pneg %p166
        $region96: #{tpu_custom_call.1} parent=93 // pred_check_branch
          %738 = sbr.rel (%p736) target = $region98
        $region97: #{tpu_custom_call.1} parent=93 // pred_region
          %s739 = sand.u32 %s151, 1
          %s740 = scalar_lea.sflag [#allocation4], %s739
          %s741 = sand.u32 %s151, 1
          %s742 = smul.addr %s741, 8
          %s743 = scalar_lea.vmem [#allocation6], %s742
          %744 = dma.done %s740, 128
        $region98: #{tpu_custom_call.1} parent=93 // pred_fallthru
          _
        // Predicated region
        $region99: #{tpu_custom_call.1} parent=93 // pred_check
          %p745 = pneg %p192
        $region100: #{tpu_custom_call.1} parent=93 // pred_check_branch
          %747 = sbr.rel (%p745) target = $region102
        $region101: #{tpu_custom_call.1} parent=93 // pred_region
          %s748 = sand.u32 %s177, 1
          %s749 = scalar_lea.sflag [#allocation8], %s748
          %s750 = sand.u32 %s177, 1
          %s751 = smul.addr %s750, 8
          %s752 = scalar_lea.vmem [#allocation7], %s751
          %753 = dma.done %s749, 128
        $region102: #{tpu_custom_call.1} parent=93 // pred_fallthru
          _
      $region94: #{tpu_custom_call.1} parent=5 // pred_fallthru
        _
    $region6: #{tpu_custom_call.1} parent=1 // loop_footer
      %s26 = sadd.s32 1, %s22
    $region7: #{tpu_custom_call.1} parent=1 // loop_footer_branch
      %21 = sbr.rel target = $region3
    $region8: #{tpu_custom_call.1} parent=1 // loop_exit
      _
    %754 = vsyncpa [#allocation3], 1
    %s755 = scalar_lea.sflag [#allocation3], 1
    %756 = vsyncpa %s755, 1
    %757 = vsyncpa [#allocation4], 1
    %s758 = scalar_lea.sflag [#allocation4], 1
    %759 = vsyncpa %s758, 1
    %760 = vsyncpa [#allocation8], 1
    %s761 = scalar_lea.sflag [#allocation8], 1
    %762 = vsyncpa %s761, 1

</llo_original>
